<compile_context>
chip_gen: v5e
topology: v5e:2x2
jax: 0.10.0
libtpu: 0.0.40
codegen_flags: <defaults>
</compile_context>

<pallas_src>
import functools
import math

import jax
import jax.numpy as jnp
from jax.experimental import pallas as pl
from jax.experimental.pallas import tpu as pltpu

C_OUT = 64   # Conv2d out channels
KW = 4       # Conv2d kernel width -> number of taps

MOD_TAPS = {
    "c": ((0, 0), (0, 1), (0, 2), (0, 3)),
    "s": ((0, 0), (0, 1), (1, 0), (1, 1)),
    "x": ((0, 0), (1, 1), (2, 2), (3, 3)),
}


def _conv1_kernel(v_ref, w_ref, b_ref, out_ref):
    """Batched 4-tap combine on the VPU.

    v_ref  : (TB, KW, LT) f32 -- stacked shifted tap views, pixels on lanes.
    w_ref  : (C_OUT, KW)  f32 -- Conv2d(1, 64, (1, 4)) weight, channels on sublanes.
    b_ref  : (C_OUT, 1)   f32 -- bias.
    out_ref: (TB, C_OUT, LT) f32 -- channels on sublanes, pixels on lanes (lane-dense).
    """
    v = v_ref[...]                      # load once per step
    w = w_ref[...]
    # out[p, o, l] = sum_t w[o, t] * v[p, t, l] + b[o]
    acc = w[jnp.newaxis, :, 0:1] * v[:, 0:1, :]          # (1,64,1)*(TB,1,LT)
    for t in range(1, KW):                                # static unroll, 4 taps
        acc = acc + w[jnp.newaxis, :, t:t + 1] * v[:, t:t + 1, :]
    acc = acc + b_ref[...][jnp.newaxis]                   # (1,64,1) bias
    # TODO(synk): offer bf16 output (cast here + out_shape dtype) if downstream
    # consumers accept it; the 64xL store is ~94% of HBM traffic.
    out_ref[...] = acc.astype(out_ref.dtype)


def init_conv1_params(key, k_size=3):
    """Conv2d(1, 64, (1, 4)) params: kaiming_normal_ weight, zero bias."""
    del k_size
    # PyTorch weight shape (64, 1, 1, 4); kaiming_normal_ std = sqrt(2 / fan_in).
    std = math.sqrt(2.0 / (1 * 1 * KW))
    w = jax.random.normal(key, (C_OUT, 1, 1, KW), dtype=jnp.float32) * std
    b = jnp.zeros((C_OUT,), dtype=jnp.float32)
    return w[:, 0, 0, :], b              # (64, 4), (64,)


def _fold_nonoverlap(y, h_out, w_out, s):
    """F.fold(output_size, kernel_size=s, stride=s) on non-overlapping windows."""
    b, css, _ = y.shape
    cf = css // (s * s)
    hp, wp = h_out // s, w_out // s
    y = y.reshape(b, cf, s, s, hp, wp)
    y = jnp.transpose(y, (0, 1, 4, 2, 5, 3))  # (B, Cf, Hp, S, Wp, S); no-op for s==1
    return y.reshape(b, cf, h_out, w_out)


def _vmem_limit_bytes():
    """~48 MiB on v7x (64 MiB physical), ~96 MiB on v5e/v6e (128 MiB physical)."""
    try:
        cap = pltpu.get_tpu_info().vmem_capacity_bytes
    except Exception:  # pragma: no cover - conservative fallback
        cap = 64 * 1024 * 1024
    return int(min(96 * 1024 * 1024, cap * 3 // 4))


def _choose_tb(bc):
    """Planes per grid step; keep >= 2 BC steps so v7x megacore has work."""
    tb = min(32, bc)
    while bc > 1 and tb > 1 and pl.cdiv(bc, tb) < 2:
        tb = pl.cdiv(tb, 2)
    return max(tb, 1)


def _choose_l_tile(l, tb, budget_bytes):
    """Largest L tile whose double-buffered in+out blocks fit the VMEM budget."""
    per_lane = 2 * tb * (KW + C_OUT) * 4       # 2 buffers x (input + output) x f32
    max_lt = max(budget_bytes // per_lane, 128)
    if l <= max_lt:
        return l                                # single full-L, lane-dense tile
    return max((max_lt // 128) * 128, 128)      # lane-aligned multiple of 128


@functools.partial(jax.jit, static_argnames=("mod", "k_size", "s"))
def conv1_forward(x, w_t, bias, *, mod="s", k_size=3, s=1):
    # layout: x is NCHW (B, C, H, W); output (B, C*64, (H-K+1)*S, (W-K+1)*S).
    b, c, h, w = x.shape
    p = k_size - 1
    hp, wp = h - p, w - p
    l = hp * wp
    bc = b * c

    taps = MOD_TAPS[mod]
    if any(kh >= k_size or kw >= k_size for kh, kw in taps):
        raise ValueError(f"mod={mod!r} indexes outside a {k_size}x{k_size} patch")

    # One stacked, lane-dense tap array: (BC, 4, L) -> one DMA / buffer pair per step.
    # TODO(synk): for large lane-dense planes, pass x itself and take the 4 static
    # tap slices in-kernel to avoid this extra HBM materialization pass.
    views = jnp.stack(
        [x[:, :, kh:kh + hp, kw:kw + wp].reshape(bc, l) for (kh, kw) in taps],
        axis=1,
    )

    vmem_limit = _vmem_limit_bytes()
    tb = _choose_tb(bc)
    l_tile = _choose_l_tile(l, tb, budget_bytes=vmem_limit // 2)
    grid = (pl.cdiv(bc, tb), pl.cdiv(l, l_tile))

    out = pl.pallas_call(
        _conv1_kernel,
        out_shape=jax.ShapeDtypeStruct((bc, C_OUT, l), x.dtype),
        grid_spec=pltpu.PrefetchScalarGridSpec(
            num_scalar_prefetch=0,
            grid=grid,
            in_specs=[
                pl.BlockSpec((tb, KW, l_tile), lambda i, j: (i, 0, j)),
                pl.BlockSpec((C_OUT, KW), lambda i, j: (0, 0)),
                pl.BlockSpec((C_OUT, 1), lambda i, j: (0, 0)),
            ],
            out_specs=pl.BlockSpec((tb, C_OUT, l_tile), lambda i, j: (i, 0, j)),
        ),
        compiler_params=pltpu.CompilerParams(
            dimension_semantics=("parallel", "parallel"),
            vmem_limit_bytes=vmem_limit,
        ),
        cost_estimate=pl.CostEstimate(
            flops=2 * bc * l * KW * C_OUT,
            transcendentals=0,
            # Advisory; understates the XLA-side materialization of `views`.
            bytes_accessed=4 * (KW * bc * l + bc * C_OUT * l + C_OUT * KW + C_OUT),
        ),
    )(views, w_t, bias.reshape(C_OUT, 1))

    # (BC, 64, L) is already the (B, C*64, L) memory order: free reshapes only.
    y = out.reshape(b, c * C_OUT, l)
    return _fold_nonoverlap(y, hp * s, wp * s, s)


if __name__ == "__main__":
    key = jax.random.PRNGKey(0)
    k_x, k_w = jax.random.split(key)

    B, C, H, W = 2, 4, 16, 16
    K_SIZE, S = 3, 1
    MOD = "s"  # only mod valid for K=3 ('c'/'x' index outside a 3x3 patch in PyTorch too)

    x = jax.random.normal(k_x, (B, C, H, W), dtype=jnp.float32)
    w_t, bias = init_conv1_params(k_w, K_SIZE)

    out = conv1_forward(x, w_t, bias, mod=MOD, k_size=K_SIZE, s=S)
    out = jax.block_until_ready(out)

    expected_shape = (B, C * C_OUT, (H - (K_SIZE - 1)) * S, (W - (K_SIZE - 1)) * S)
    assert out.shape == expected_shape, (out.shape, expected_shape)

    # Pure-JAX reference check of the whole forward.
    taps = MOD_TAPS[MOD]
    hp, wp = H - (K_SIZE - 1), W - (K_SIZE - 1)
    feat_ref = jnp.stack(
        [x[:, :, kh:kh + hp, kw:kw + wp] for (kh, kw) in taps], axis=-1
    ).reshape(B * C * hp * wp, KW)
    ref = (feat_ref @ w_t.T + bias).reshape(B, C, hp * wp, C_OUT)
    ref = jnp.transpose(ref, (0, 1, 3, 2)).reshape(B, C * C_OUT, hp, wp)
    assert jnp.allclose(out, ref, atol=1e-5, rtol=1e-5)

    print("KERNEL_OK")
</pallas_src>

<mosaic_0001>
module attributes {stable_mosaic.version = 11 : i64} {
  func.func @_conv1_kernel(%arg0: i32, %arg1: i32, %arg2: memref<4x4x196xf32, #tpu.memory_space<vmem>>, %arg3: memref<64x4xf32, #tpu.memory_space<vmem>>, %arg4: memref<64x1xf32, #tpu.memory_space<vmem>>, %arg5: memref<4x64x196xf32, #tpu.memory_space<vmem>>) attributes {dimension_semantics = [#tpu.dimension_semantics<parallel>, #tpu.dimension_semantics<parallel>], iteration_bounds = array<i64: 2, 1>, scalar_prefetch = 0 : i64, scratch_operands = 0 : i64, tpu.core_type = #tpu.core_type<tc>, window_params = [{transform_indices = @transform_0, window_bounds = array<i64: 4, 4, 196>}, {pipeline_mode = #tpu.pipeline_mode<synchronous>, transform_indices = @transform_1, window_bounds = array<i64: 64, 4>}, {pipeline_mode = #tpu.pipeline_mode<synchronous>, transform_indices = @transform_2, window_bounds = array<i64: 64, 1>}, {transform_indices = @transform_3, window_bounds = array<i64: 4, 64, 196>}]} {
    %c0 = arith.constant 0 : index
    %c0_0 = arith.constant 0 : index
    %c0_1 = arith.constant 0 : index
    %0 = vector.load %arg2[%c0, %c0_0, %c0_1] : memref<4x4x196xf32, #tpu.memory_space<vmem>>, vector<4x4x196xf32>
    %c0_2 = arith.constant 0 : index
    %c0_3 = arith.constant 0 : index
    %1 = vector.load %arg3[%c0_2, %c0_3] : memref<64x4xf32, #tpu.memory_space<vmem>>, vector<64x4xf32>
    %2 = vector.extract_strided_slice %1 {offsets = [0, 0], sizes = [64, 1], strides = [1, 1]} : vector<64x4xf32> to vector<64x1xf32>
    %3 = vector.shape_cast %2 : vector<64x1xf32> to vector<1x64x1xf32>
    %4 = vector.extract_strided_slice %0 {offsets = [0, 0, 0], sizes = [4, 1, 196], strides = [1, 1, 1]} : vector<4x4x196xf32> to vector<4x1x196xf32>
    %5 = vector.broadcast %3 : vector<1x64x1xf32> to vector<4x64x196xf32>
    %6 = vector.broadcast %4 : vector<4x1x196xf32> to vector<4x64x196xf32>
    %7 = arith.mulf %5, %6 : vector<4x64x196xf32>
    %8 = vector.extract_strided_slice %1 {offsets = [0, 1], sizes = [64, 1], strides = [1, 1]} : vector<64x4xf32> to vector<64x1xf32>
    %9 = vector.shape_cast %8 : vector<64x1xf32> to vector<1x64x1xf32>
    %10 = vector.extract_strided_slice %0 {offsets = [0, 1, 0], sizes = [4, 1, 196], strides = [1, 1, 1]} : vector<4x4x196xf32> to vector<4x1x196xf32>
    %11 = vector.broadcast %9 : vector<1x64x1xf32> to vector<4x64x196xf32>
    %12 = vector.broadcast %10 : vector<4x1x196xf32> to vector<4x64x196xf32>
    %13 = arith.mulf %11, %12 : vector<4x64x196xf32>
    %14 = arith.addf %7, %13 : vector<4x64x196xf32>
    %15 = vector.extract_strided_slice %1 {offsets = [0, 2], sizes = [64, 1], strides = [1, 1]} : vector<64x4xf32> to vector<64x1xf32>
    %16 = vector.shape_cast %15 : vector<64x1xf32> to vector<1x64x1xf32>
    %17 = vector.extract_strided_slice %0 {offsets = [0, 2, 0], sizes = [4, 1, 196], strides = [1, 1, 1]} : vector<4x4x196xf32> to vector<4x1x196xf32>
    %18 = vector.broadcast %16 : vector<1x64x1xf32> to vector<4x64x196xf32>
    %19 = vector.broadcast %17 : vector<4x1x196xf32> to vector<4x64x196xf32>
    %20 = arith.mulf %18, %19 : vector<4x64x196xf32>
    %21 = arith.addf %14, %20 : vector<4x64x196xf32>
    %22 = vector.extract_strided_slice %1 {offsets = [0, 3], sizes = [64, 1], strides = [1, 1]} : vector<64x4xf32> to vector<64x1xf32>
    %23 = vector.shape_cast %22 : vector<64x1xf32> to vector<1x64x1xf32>
    %24 = vector.extract_strided_slice %0 {offsets = [0, 3, 0], sizes = [4, 1, 196], strides = [1, 1, 1]} : vector<4x4x196xf32> to vector<4x1x196xf32>
    %25 = vector.broadcast %23 : vector<1x64x1xf32> to vector<4x64x196xf32>
    %26 = vector.broadcast %24 : vector<4x1x196xf32> to vector<4x64x196xf32>
    %27 = arith.mulf %25, %26 : vector<4x64x196xf32>
    %28 = arith.addf %21, %27 : vector<4x64x196xf32>
    %c0_4 = arith.constant 0 : index
    %c0_5 = arith.constant 0 : index
    %29 = vector.load %arg4[%c0_4, %c0_5] : memref<64x1xf32, #tpu.memory_space<vmem>>, vector<64x1xf32>
    %30 = vector.shape_cast %29 : vector<64x1xf32> to vector<1x64x1xf32>
    %31 = vector.broadcast %30 : vector<1x64x1xf32> to vector<4x64x196xf32>
    %32 = arith.addf %28, %31 : vector<4x64x196xf32>
    %c0_6 = arith.constant 0 : index
    %c0_7 = arith.constant 0 : index
    %c0_8 = arith.constant 0 : index
    %33 = vector.load %arg5[%c0_6, %c0_7, %c0_8] : memref<4x64x196xf32, #tpu.memory_space<vmem>>, vector<4x64x196xf32>
    tpu.vector_store %arg5[%c0_6, %c0_7, %c0_8], %32 {strides = array<i32>} : memref<4x64x196xf32, #tpu.memory_space<vmem>>, vector<4x64x196xf32>,
    return
  }
  func.func @transform_0(%arg0: i32, %arg1: i32) -> (i32, i32, i32) {
    %c0_i32 = arith.constant 0 : i32
    %c0_i32_0 = arith.constant 0 : i32
    return %arg0, %c0_i32, %arg1 : i32, i32, i32
  }
  func.func @transform_1(%arg0: i32, %arg1: i32) -> (i32, i32) {
    %c0_i32 = arith.constant 0 : i32
    %c0_i32_0 = arith.constant 0 : i32
    %c0_i32_1 = arith.constant 0 : i32
    return %c0_i32, %c0_i32_0 : i32, i32
  }
  func.func @transform_2(%arg0: i32, %arg1: i32) -> (i32, i32) {
    %c0_i32 = arith.constant 0 : i32
    %c0_i32_0 = arith.constant 0 : i32
    %c0_i32_1 = arith.constant 0 : i32
    return %c0_i32, %c0_i32_0 : i32, i32
  }
  func.func @transform_3(%arg0: i32, %arg1: i32) -> (i32, i32, i32) {
    %c0_i32 = arith.constant 0 : i32
    %c0_i32_0 = arith.constant 0 : i32
    return %arg0, %c0_i32, %arg1 : i32, i32, i32
  }
}

</mosaic_0001>

<llo_original>
// kernel: conv1_forward.1
$region0: #{conv1_forward.1}
  #allocation0 [shape = 'u32[]', space=smem, size = 0x4, offset = 0x4, fixed_abs, tag = 'smem constant byte address 0x4 - core index']
  #allocation1 [shape = 'u32[72,128]{1,0:T(1,128)}', space=vmem, size = 0x9000, scoped, tag = 'internal scratch']
  %s0 = inlined_call_operand.vmem [shape: f32[8,4,196], index: 0, kind: input, shape index: {}]
  %s1 = inlined_call_operand.vmem [shape: f32[64,4], index: 1, kind: input, shape index: {}]
  %s2 = inlined_call_operand.vmem [shape: f32[64,1], index: 2, kind: input, shape index: {}]
  %s3 = inlined_call_operand.vmem [shape: f32[8,64,196], index: 3, kind: output, shape index: {}]
  %s4 = sld [smem:[#allocation0]]
  $region45: #{conv1_forward.1} parent=0
    _
  %s6 = ssub.s32 1, %s4
  %s7 = scalar_select 0, %s6, %s4
  loop: start=0, step=1, limit=4
  $region2: #{conv1_forward.1} parent=0 // loop_pre_header
    _
  $region3: #{conv1_forward.1} parent=0 // loop_header
    %s9 = sphi 0, %s13
    %p10 = scmp.ge.s32.totalorder %s9, 4
    %s16 = sphi 0, %s28
    %s17 = sphi 0, %s24
    %s18 = sphi 0, %s16
    %s19 = sphi 0, %s17
    %s20 = sphi 0, %s18
    %s21 = sphi 0, %s19
    %s33 = sphi 0, %s35
    %s36 = sphi 0, %s33
    %s37 = sphi 0, %s36
    %s53 = sphi 0, %s37
    %s57 = sphi 0, %s57
    %s59 = sphi 0, %s57
    %s60 = sphi 0, %s59
    %s74 = sphi 0, %s60
    %s78 = sphi 0, %s78
    %s80 = sphi 0, %s78
    %s81 = sphi 0, %s80
    %s95 = sphi 0, %s81
    %s103 = sphi 0, %s105
    %s106 = sphi 0, %s103
    %s107 = sphi 0, %s106
    %s123 = sphi 0, %s107
  $region4: #{conv1_forward.1} parent=0 // loop_header_branch
    %12 = sbr.rel (%p10) target = $region8
  $region5: #{conv1_forward.1} parent=0 // loop_body
    %s14 = ssub.s32 %s9, 1
    %s15 = ssub.s32 %s9, 2
    %s22 = sadd.s32 1, %s17
    %p23 = scmp.ge.s32.totalorder %s22, 1
    %s24 = scalar_select %p23, 0, %s22
    %s25 = sadd.s32 1, %s16
    %s26 = scalar_select %p23, %s25, %s16
    %p27 = scmp.ge.s32.totalorder %s26, 2
    %s28 = scalar_select %p27, 0, %s26
    %s29 = ssub.s32 %s16, %s28
    %s30 = ssub.s32 %s17, %s24
    %s31 = sor.u32 %s29, %s30
    %p32 = scmp.eq.s32.totalorder %s31, 0
    %s34 = sadd.s32 %s33, 1
    %s35 = scalar_select %p32, %s33, %s34
    %p38 = pneg %p32
    %p39 = scmp.eq.s32.totalorder %s9, 1
    %p40 = por %p38, %p39
    %p41 = scmp.ne.s32.totalorder %s33, %s36
    %p42 = scmp.eq.s32.totalorder %s9, 0
    %p43 = por %p41, %p42
    %p44 = scmp.ne.s32.totalorder %s33, %s36
    %p45 = scmp.eq.s32.totalorder %s14, 1
    %p46 = por %p44, %p45
    %p47 = scmp.ne.s32.totalorder %s36, %s37
    %p48 = scmp.eq.s32.totalorder %s14, 0
    %p49 = por %p47, %p48
    %p50 = scmp.ne.s32.totalorder %s36, %s37
    %p51 = scmp.eq.s32.totalorder %s15, 1
    %p52 = por %p50, %p51
    %p54 = scmp.ne.s32.totalorder %s37, %s53
    %p55 = scmp.eq.s32.totalorder %s15, 0
    %p56 = por %p54, %p55
    %s58 = sadd.s32 %s57, 1
    %p61 = scmp.eq.s32.totalorder %s9, 1
    %p62 = scmp.ne.s32.totalorder %s57, %s59
    %p63 = scmp.eq.s32.totalorder %s9, 0
    %p64 = por %p62, %p63
    %p65 = scmp.ne.s32.totalorder %s57, %s59
    %p66 = scmp.eq.s32.totalorder %s14, 1
    %p67 = por %p65, %p66
    %p68 = scmp.ne.s32.totalorder %s59, %s60
    %p69 = scmp.eq.s32.totalorder %s14, 0
    %p70 = por %p68, %p69
    %p71 = scmp.ne.s32.totalorder %s59, %s60
    %p72 = scmp.eq.s32.totalorder %s15, 1
    %p73 = por %p71, %p72
    %p75 = scmp.ne.s32.totalorder %s60, %s74
    %p76 = scmp.eq.s32.totalorder %s15, 0
    %p77 = por %p75, %p76
    %s79 = sadd.s32 %s78, 1
    %p82 = scmp.eq.s32.totalorder %s9, 1
    %p83 = scmp.ne.s32.totalorder %s78, %s80
    %p84 = scmp.eq.s32.totalorder %s9, 0
    %p85 = por %p83, %p84
    %p86 = scmp.ne.s32.totalorder %s78, %s80
    %p87 = scmp.eq.s32.totalorder %s14, 1
    %p88 = por %p86, %p87
    %p89 = scmp.ne.s32.totalorder %s80, %s81
    %p90 = scmp.eq.s32.totalorder %s14, 0
    %p91 = por %p89, %p90
    %p92 = scmp.ne.s32.totalorder %s80, %s81
    %p93 = scmp.eq.s32.totalorder %s15, 1
    %p94 = por %p92, %p93
    %p96 = scmp.ne.s32.totalorder %s81, %s95
    %p97 = scmp.eq.s32.totalorder %s15, 0
    %p98 = por %p96, %p97
    %s99 = ssub.s32 %s16, %s28
    %s100 = ssub.s32 %s17, %s24
    %s101 = sor.u32 %s99, %s100
    %p102 = scmp.eq.s32.totalorder %s101, 0
    %s104 = sadd.s32 %s103, 1
    %s105 = scalar_select %p102, %s103, %s104
    %p108 = pneg %p102
    %p109 = scmp.eq.s32.totalorder %s9, 1
    %p110 = por %p108, %p109
    %p111 = scmp.ne.s32.totalorder %s103, %s106
    %p112 = scmp.eq.s32.totalorder %s9, 0
    %p113 = por %p111, %p112
    %p114 = scmp.ne.s32.totalorder %s103, %s106
    %p115 = scmp.eq.s32.totalorder %s14, 1
    %p116 = por %p114, %p115
    %p117 = scmp.ne.s32.totalorder %s106, %s107
    %p118 = scmp.eq.s32.totalorder %s14, 0
    %p119 = por %p117, %p118
    %p120 = scmp.ne.s32.totalorder %s106, %s107
    %p121 = scmp.eq.s32.totalorder %s15, 1
    %p122 = por %p120, %p121
    %p124 = scmp.ne.s32.totalorder %s107, %s123
    %p125 = scmp.eq.s32.totalorder %s15, 0
    %p126 = por %p124, %p125
    %p127 = scmp.le.s32.totalorder 1, %s9
    %p128 = scmp.lt.s32.totalorder %s9, 3
    %p129 = pnand %p127, %p128
    %p130 = pneg %p129
    // Predicated region
    $region9: #{conv1_forward.1} parent=5 // pred_check
      _
    $region10: #{conv1_forward.1} parent=5 // pred_check_branch
      %132 = sbr.rel (%p129) target = $region12
    $region11: #{conv1_forward.1} parent=5 // pred_region
      %s133 = ssub.s32 %s9, 1
      // Predicated region
      $region13: #{conv1_forward.1} parent=11 // pred_check
        %p134 = pneg %p70
      $region14: #{conv1_forward.1} parent=11 // pred_check_branch
        %136 = sbr.rel (%p134) target = $region16
      $region15: #{conv1_forward.1} parent=11 // pred_region
        _
      $region16: #{conv1_forward.1} parent=11 // pred_fallthru
        _
      // Predicated region
      $region17: #{conv1_forward.1} parent=11 // pred_check
        %p137 = pneg %p91
      $region18: #{conv1_forward.1} parent=11 // pred_check_branch
        %139 = sbr.rel (%p137) target = $region20
      $region19: #{conv1_forward.1} parent=11 // pred_region
        _
      $region20: #{conv1_forward.1} parent=11 // pred_fallthru
        _
    $region12: #{conv1_forward.1} parent=5 // pred_fallthru
      _
    %p140 = scmp.lt.s32.totalorder %s9, 2
    // Predicated region
    $region21: #{conv1_forward.1} parent=5 // pred_check
      %p141 = pneg %p140
    $region22: #{conv1_forward.1} parent=5 // pred_check_branch
      %143 = sbr.rel (%p141) target = $region24
    $region23: #{conv1_forward.1} parent=5 // pred_region
      // Predicated region
      $region25: #{conv1_forward.1} parent=23 // pred_check
        %p144 = pneg %p43
      $region26: #{conv1_forward.1} parent=23 // pred_check_branch
        %146 = sbr.rel (%p144) target = $region28
      $region27: #{conv1_forward.1} parent=23 // pred_region
        %s147 = smul.u32 4, %s16
        %s148 = smul.u32 2, %s17
        %p149 = scmp.lt.s32.totalorder %s147, 7
        %s150 = scalar_select %p149, %s147, 7
        %p151 = scmp.lt.s32.totalorder %s148, 1
        %s152 = scalar_select %p151, %s148, 1
        %s153 = smul.addr %s150, 2
        %s154 = sadd.s32 %s152, %s153
        %s155 = smul.addr %s154, 4
        %s156 = scalar_lea.vmem %s0, %s155
        %s157 = smul.u32 4, %s16
        %s158 = smul.u32 2, %s17
      $region28: #{conv1_forward.1} parent=23 // pred_fallthru
        _
    $region24: #{conv1_forward.1} parent=5 // pred_fallthru
      _
    %p159 = scmp.le.s32.totalorder 1, %s9
    %p160 = scmp.lt.s32.totalorder %s9, 3
    %p161 = pnand %p159, %p160
    %p162 = pneg %p161
    // Predicated region
    $region29: #{conv1_forward.1} parent=5 // pred_check
      _
    $region30: #{conv1_forward.1} parent=5 // pred_check_branch
      %164 = sbr.rel (%p161) target = $region32
    $region31: #{conv1_forward.1} parent=5 // pred_region
      %s165 = ssub.s32 %s9, 1
      %s166 = smul.u32 4, %s18
      %s167 = smul.u32 2, %s19
      %p168 = scmp.lt.s32.totalorder %s166, 7
      %s169 = scalar_select %p168, %s166, 7
      %p170 = scmp.lt.s32.totalorder %s167, 1
      %s171 = scalar_select %p170, %s167, 1
      %s172 = smul.addr %s169, 2
      %s173 = sadd.s32 %s171, %s172
      %s174 = smul.addr %s173, 4
      %s175 = scalar_lea.vmem %s0, %s174
      %p176 = pneg %p49
      %p177 = pneg %p46
      %p178 = pneg %p70
      %p179 = pneg %p67
      %p180 = pneg %p91
      %p181 = pneg %p88
      %p182 = pneg %p119
      %p183 = pneg %p116
      %s184 = smul.u32 4, %s18
      %s185 = smul.u32 2, %s19
      %p186 = scmp.lt.s32.totalorder %s184, 7
      %s187 = scalar_select %p186, %s184, 7
      %p188 = scmp.lt.s32.totalorder %s185, 1
      %s189 = scalar_select %p188, %s185, 1
      %s190 = smul.addr %s187, 16
      %s191 = sadd.s32 %s189, %s190
      %s192 = smul.addr %s191, 8
      %s193 = scalar_lea.vmem %s3, %s192
      %s194 = smul.u32 4, %s18
      %s195 = smul.u32 2, %s19
      %p196 = scmp.lt.s32.totalorder %s194, 7
      %s197 = scalar_select %p196, %s194, 7
      %p198 = scmp.lt.s32.totalorder %s195, 1
      %s199 = scalar_select %p198, %s195, 1
      %s200 = smul.addr %s197, 2
      %s201 = sadd.s32 %s199, %s200
      %s202 = smul.addr %s201, 4
      %s203 = scalar_lea.vmem %s0, %s202
      %s204 = smul.u32 4, %s18
      %s205 = smul.u32 2, %s19
      %s206 = smul.u32 4, %s18
      %s207 = smul.u32 2, %s19
      %p208 = scmp.lt.s32.totalorder %s206, 7
      %s209 = scalar_select %p208, %s206, 7
      %p210 = scmp.lt.s32.totalorder %s207, 1
      %s211 = scalar_select %p210, %s207, 1
      %s212 = smul.addr %s209, 16
      %s213 = sadd.s32 %s211, %s212
      %s214 = smul.addr %s213, 8
      %s215 = scalar_lea.vmem %s3, %s214
      %s216 = smul.u32 4, %s18
      %s217 = smul.u32 2, %s19
      %v218 = vld [vmem:[%s203] sm:$0xff]
      %v219 = vld [vmem:[%s203 + $0x8] sm:$0xff]
      %v220 = vld [vmem:[%s203 + $0x10] sm:$0xff]
      %v221 = vld [vmem:[%s203 + $0x18] sm:$0xff]
      %v222 = vld [vmem:[%s1] sm:$0xff]
      %v223 = vld [vmem:[%s1 + $0x8] sm:$0xff]
      %v224 = vld [vmem:[%s1 + $0x10] sm:$0xff]
      %v225 = vld [vmem:[%s1 + $0x18] sm:$0xff]
      %v226 = vld [vmem:[%s1 + $0x20] sm:$0xff]
      %v227 = vld [vmem:[%s1 + $0x28] sm:$0xff]
      %v228 = vld [vmem:[%s1 + $0x30] sm:$0xff]
      %v229 = vld [vmem:[%s1 + $0x38] sm:$0xff]
      %231 = vset.pattern.permute.xlu0 0
      %232 = vperm.xlu0 %231, %v222
      %v233 = vpop.permute.xlu0 %232
      %236 = vset.pattern.permute.xlu0 0
      %237 = vperm.xlu0 %236, %v223
      %v238 = vpop.permute.xlu0 %237
      %241 = vset.pattern.permute.xlu0 0
      %242 = vperm.xlu0 %241, %v224
      %v243 = vpop.permute.xlu0 %242
      %246 = vset.pattern.permute.xlu0 0
      %247 = vperm.xlu0 %246, %v225
      %v248 = vpop.permute.xlu0 %247
      %251 = vset.pattern.permute.xlu0 0
      %252 = vperm.xlu0 %251, %v226
      %v253 = vpop.permute.xlu0 %252
      %256 = vset.pattern.permute.xlu0 0
      %257 = vperm.xlu0 %256, %v227
      %v258 = vpop.permute.xlu0 %257
      %261 = vset.pattern.permute.xlu0 0
      %262 = vperm.xlu0 %261, %v228
      %v263 = vpop.permute.xlu0 %262
      %266 = vset.pattern.permute.xlu0 0
      %267 = vperm.xlu0 %266, %v229
      %v268 = vpop.permute.xlu0 %267
      %v274 = vperm.slane %v218, 0
      %v275 = vperm.slane %v218, 4
      %v276 = vperm.slane %v219, 0
      %v277 = vperm.slane %v219, 4
      %v278 = vperm.slane %v220, 0
      %v279 = vperm.slane %v220, 4
      %v280 = vperm.slane %v221, 0
      %v281 = vperm.slane %v221, 4
      %v290 = vperm.slane %v274, 0
      %v291 = vperm.slane %v275, 0
      %v292 = vperm.slane %v276, 0
      %v293 = vperm.slane %v277, 0
      %v294 = vperm.slane %v278, 0
      %v295 = vperm.slane %v279, 0
      %v296 = vperm.slane %v280, 0
      %v297 = vperm.slane %v281, 0
      %v298 = vmul.f32 %v233, %v290
      %v299 = vmul.f32 %v233, %v291
      %v300 = vmul.f32 %v238, %v290
      %v301 = vmul.f32 %v238, %v291
      %v302 = vmul.f32 %v243, %v290
      %v303 = vmul.f32 %v243, %v291
      %v304 = vmul.f32 %v248, %v290
      %v305 = vmul.f32 %v248, %v291
      %v306 = vmul.f32 %v253, %v290
      %v307 = vmul.f32 %v253, %v291
      %v308 = vmul.f32 %v258, %v290
      %v309 = vmul.f32 %v258, %v291
      %v310 = vmul.f32 %v263, %v290
      %v311 = vmul.f32 %v263, %v291
      %v312 = vmul.f32 %v268, %v290
      %v313 = vmul.f32 %v268, %v291
      %v314 = vmul.f32 %v233, %v292
      %v315 = vmul.f32 %v233, %v293
      %v316 = vmul.f32 %v238, %v292
      %v317 = vmul.f32 %v238, %v293
      %v318 = vmul.f32 %v243, %v292
      %v319 = vmul.f32 %v243, %v293
      %v320 = vmul.f32 %v248, %v292
      %v321 = vmul.f32 %v248, %v293
      %v322 = vmul.f32 %v253, %v292
      %v323 = vmul.f32 %v253, %v293
      %v324 = vmul.f32 %v258, %v292
      %v325 = vmul.f32 %v258, %v293
      %v326 = vmul.f32 %v263, %v292
      %v327 = vmul.f32 %v263, %v293
      %v328 = vmul.f32 %v268, %v292
      %v329 = vmul.f32 %v268, %v293
      %v330 = vmul.f32 %v233, %v294
      %v331 = vmul.f32 %v233, %v295
      %v332 = vmul.f32 %v238, %v294
      %v333 = vmul.f32 %v238, %v295
      %v334 = vmul.f32 %v243, %v294
      %v335 = vmul.f32 %v243, %v295
      %v336 = vmul.f32 %v248, %v294
      %v337 = vmul.f32 %v248, %v295
      %v338 = vmul.f32 %v253, %v294
      %v339 = vmul.f32 %v253, %v295
      %v340 = vmul.f32 %v258, %v294
      %v341 = vmul.f32 %v258, %v295
      %v342 = vmul.f32 %v263, %v294
      %v343 = vmul.f32 %v263, %v295
      %v344 = vmul.f32 %v268, %v294
      %v345 = vmul.f32 %v268, %v295
      %v346 = vmul.f32 %v233, %v296
      %v347 = vmul.f32 %v233, %v297
      %v348 = vmul.f32 %v238, %v296
      %v349 = vmul.f32 %v238, %v297
      %v350 = vmul.f32 %v243, %v296
      %v351 = vmul.f32 %v243, %v297
      %v352 = vmul.f32 %v248, %v296
      %v353 = vmul.f32 %v248, %v297
      %v354 = vmul.f32 %v253, %v296
      %v355 = vmul.f32 %v253, %v297
      %v356 = vmul.f32 %v258, %v296
      %v357 = vmul.f32 %v258, %v297
      %v358 = vmul.f32 %v263, %v296
      %v359 = vmul.f32 %v263, %v297
      %v360 = vmul.f32 %v268, %v296
      %v361 = vmul.f32 %v268, %v297
      %362 = vset.pattern.permute.xlu0 1
      %363 = vperm.xlu0 %362, %v222
      %v364 = vpop.permute.xlu0 %363
      %366 = vset.pattern.permute.xlu0 1
      %367 = vperm.xlu0 %366, %v223
      %v368 = vpop.permute.xlu0 %367
      %370 = vset.pattern.permute.xlu0 1
      %371 = vperm.xlu0 %370, %v224
      %v372 = vpop.permute.xlu0 %371
      %374 = vset.pattern.permute.xlu0 1
      %375 = vperm.xlu0 %374, %v225
      %v376 = vpop.permute.xlu0 %375
      %378 = vset.pattern.permute.xlu0 1
      %379 = vperm.xlu0 %378, %v226
      %v380 = vpop.permute.xlu0 %379
      %382 = vset.pattern.permute.xlu0 1
      %383 = vperm.xlu0 %382, %v227
      %v384 = vpop.permute.xlu0 %383
      %386 = vset.pattern.permute.xlu0 1
      %387 = vperm.xlu0 %386, %v228
      %v388 = vpop.permute.xlu0 %387
      %390 = vset.pattern.permute.xlu0 1
      %391 = vperm.xlu0 %390, %v229
      %v392 = vpop.permute.xlu0 %391
      %v394 = vperm.slane %v218, 1
      %v395 = vperm.slane %v218, 5
      %v396 = vperm.slane %v219, 1
      %v397 = vperm.slane %v219, 5
      %v398 = vperm.slane %v220, 1
      %v399 = vperm.slane %v220, 5
      %v400 = vperm.slane %v221, 1
      %v401 = vperm.slane %v221, 5
      %v410 = vperm.slane %v394, 1
      %v411 = vperm.slane %v395, 1
      %v412 = vperm.slane %v396, 1
      %v413 = vperm.slane %v397, 1
      %v414 = vperm.slane %v398, 1
      %v415 = vperm.slane %v399, 1
      %v416 = vperm.slane %v400, 1
      %v417 = vperm.slane %v401, 1
      %v418 = vmul.f32 %v364, %v410
      %v419 = vmul.f32 %v364, %v411
      %v420 = vmul.f32 %v368, %v410
      %v421 = vmul.f32 %v368, %v411
      %v422 = vmul.f32 %v372, %v410
      %v423 = vmul.f32 %v372, %v411
      %v424 = vmul.f32 %v376, %v410
      %v425 = vmul.f32 %v376, %v411
      %v426 = vmul.f32 %v380, %v410
      %v427 = vmul.f32 %v380, %v411
      %v428 = vmul.f32 %v384, %v410
      %v429 = vmul.f32 %v384, %v411
      %v430 = vmul.f32 %v388, %v410
      %v431 = vmul.f32 %v388, %v411
      %v432 = vmul.f32 %v392, %v410
      %v433 = vmul.f32 %v392, %v411
      %v434 = vmul.f32 %v364, %v412
      %v435 = vmul.f32 %v364, %v413
      %v436 = vmul.f32 %v368, %v412
      %v437 = vmul.f32 %v368, %v413
      %v438 = vmul.f32 %v372, %v412
      %v439 = vmul.f32 %v372, %v413
      %v440 = vmul.f32 %v376, %v412
      %v441 = vmul.f32 %v376, %v413
      %v442 = vmul.f32 %v380, %v412
      %v443 = vmul.f32 %v380, %v413
      %v444 = vmul.f32 %v384, %v412
      %v445 = vmul.f32 %v384, %v413
      %v446 = vmul.f32 %v388, %v412
      %v447 = vmul.f32 %v388, %v413
      %v448 = vmul.f32 %v392, %v412
      %v449 = vmul.f32 %v392, %v413
      %v450 = vmul.f32 %v364, %v414
      %v451 = vmul.f32 %v364, %v415
      %v452 = vmul.f32 %v368, %v414
      %v453 = vmul.f32 %v368, %v415
      %v454 = vmul.f32 %v372, %v414
      %v455 = vmul.f32 %v372, %v415
      %v456 = vmul.f32 %v376, %v414
      %v457 = vmul.f32 %v376, %v415
      %v458 = vmul.f32 %v380, %v414
      %v459 = vmul.f32 %v380, %v415
      %v460 = vmul.f32 %v384, %v414
      %v461 = vmul.f32 %v384, %v415
      %v462 = vmul.f32 %v388, %v414
      %v463 = vmul.f32 %v388, %v415
      %v464 = vmul.f32 %v392, %v414
      %v465 = vmul.f32 %v392, %v415
      %v466 = vmul.f32 %v364, %v416
      %v467 = vmul.f32 %v364, %v417
      %v468 = vmul.f32 %v368, %v416
      %v469 = vmul.f32 %v368, %v417
      %v470 = vmul.f32 %v372, %v416
      %v471 = vmul.f32 %v372, %v417
      %v472 = vmul.f32 %v376, %v416
      %v473 = vmul.f32 %v376, %v417
      %v474 = vmul.f32 %v380, %v416
      %v475 = vmul.f32 %v380, %v417
      %v476 = vmul.f32 %v384, %v416
      %v477 = vmul.f32 %v384, %v417
      %v478 = vmul.f32 %v388, %v416
      %v479 = vmul.f32 %v388, %v417
      %v480 = vmul.f32 %v392, %v416
      %v481 = vmul.f32 %v392, %v417
      %v482 = vadd.f32 %v298, %v418
      %v483 = vadd.f32 %v299, %v419
      %v484 = vadd.f32 %v300, %v420
      %v485 = vadd.f32 %v301, %v421
      %v486 = vadd.f32 %v302, %v422
      %v487 = vadd.f32 %v303, %v423
      %v488 = vadd.f32 %v304, %v424
      %v489 = vadd.f32 %v305, %v425
      %v490 = vadd.f32 %v306, %v426
      %v491 = vadd.f32 %v307, %v427
      %v492 = vadd.f32 %v308, %v428
      %v493 = vadd.f32 %v309, %v429
      %v494 = vadd.f32 %v310, %v430
      %v495 = vadd.f32 %v311, %v431
      %v496 = vadd.f32 %v312, %v432
      %v497 = vadd.f32 %v313, %v433
      %v498 = vadd.f32 %v314, %v434
      %v499 = vadd.f32 %v315, %v435
      %v500 = vadd.f32 %v316, %v436
      %v501 = vadd.f32 %v317, %v437
      %v502 = vadd.f32 %v318, %v438
      %v503 = vadd.f32 %v319, %v439
      %v504 = vadd.f32 %v320, %v440
      %v505 = vadd.f32 %v321, %v441
      %v506 = vadd.f32 %v322, %v442
      %v507 = vadd.f32 %v323, %v443
      %v508 = vadd.f32 %v324, %v444
      %v509 = vadd.f32 %v325, %v445
      %v510 = vadd.f32 %v326, %v446
      %v511 = vadd.f32 %v327, %v447
      %v512 = vadd.f32 %v328, %v448
      %v513 = vadd.f32 %v329, %v449
      %v514 = vadd.f32 %v330, %v450
      %v515 = vadd.f32 %v331, %v451
      %v516 = vadd.f32 %v332, %v452
      %v517 = vadd.f32 %v333, %v453
      %v518 = vadd.f32 %v334, %v454
      %v519 = vadd.f32 %v335, %v455
      %v520 = vadd.f32 %v336, %v456
      %v521 = vadd.f32 %v337, %v457
      %v522 = vadd.f32 %v338, %v458
      %v523 = vadd.f32 %v339, %v459
      %v524 = vadd.f32 %v340, %v460
      %v525 = vadd.f32 %v341, %v461
      %v526 = vadd.f32 %v342, %v462
      %v527 = vadd.f32 %v343, %v463
      %v528 = vadd.f32 %v344, %v464
      %v529 = vadd.f32 %v345, %v465
      %v530 = vadd.f32 %v346, %v466
      %v531 = vadd.f32 %v347, %v467
      %v532 = vadd.f32 %v348, %v468
      %v533 = vadd.f32 %v349, %v469
      %v534 = vadd.f32 %v350, %v470
      %v535 = vadd.f32 %v351, %v471
      %v536 = vadd.f32 %v352, %v472
      %v537 = vadd.f32 %v353, %v473
      %v538 = vadd.f32 %v354, %v474
      %v539 = vadd.f32 %v355, %v475
      %v540 = vadd.f32 %v356, %v476
      %v541 = vadd.f32 %v357, %v477
      %v542 = vadd.f32 %v358, %v478
      %v543 = vadd.f32 %v359, %v479
      %v544 = vadd.f32 %v360, %v480
      %v545 = vadd.f32 %v361, %v481
      %546 = vset.pattern.permute.xlu0 2
      %547 = vperm.xlu0 %546, %v222
      %v548 = vpop.permute.xlu0 %547
      %550 = vset.pattern.permute.xlu0 2
      %551 = vperm.xlu0 %550, %v223
      %v552 = vpop.permute.xlu0 %551
      %554 = vset.pattern.permute.xlu0 2
      %555 = vperm.xlu0 %554, %v224
      %v556 = vpop.permute.xlu0 %555
      %558 = vset.pattern.permute.xlu0 2
      %559 = vperm.xlu0 %558, %v225
      %v560 = vpop.permute.xlu0 %559
      %562 = vset.pattern.permute.xlu0 2
      %563 = vperm.xlu0 %562, %v226
      %v564 = vpop.permute.xlu0 %563
      %566 = vset.pattern.permute.xlu0 2
      %567 = vperm.xlu0 %566, %v227
      %v568 = vpop.permute.xlu0 %567
      %570 = vset.pattern.permute.xlu0 2
      %571 = vperm.xlu0 %570, %v228
      %v572 = vpop.permute.xlu0 %571
      %574 = vset.pattern.permute.xlu0 2
      %575 = vperm.xlu0 %574, %v229
      %v576 = vpop.permute.xlu0 %575
      %v578 = vperm.slane %v218, 2
      %v579 = vperm.slane %v218, 6
      %v580 = vperm.slane %v219, 2
      %v581 = vperm.slane %v219, 6
      %v582 = vperm.slane %v220, 2
      %v583 = vperm.slane %v220, 6
      %v584 = vperm.slane %v221, 2
      %v585 = vperm.slane %v221, 6
      %v594 = vperm.slane %v578, 2
      %v595 = vperm.slane %v579, 2
      %v596 = vperm.slane %v580, 2
      %v597 = vperm.slane %v581, 2
      %v598 = vperm.slane %v582, 2
      %v599 = vperm.slane %v583, 2
      %v600 = vperm.slane %v584, 2
      %v601 = vperm.slane %v585, 2
      %v602 = vmul.f32 %v548, %v594
      %v603 = vmul.f32 %v548, %v595
      %v604 = vmul.f32 %v552, %v594
      %v605 = vmul.f32 %v552, %v595
      %v606 = vmul.f32 %v556, %v594
      %v607 = vmul.f32 %v556, %v595
      %v608 = vmul.f32 %v560, %v594
      %v609 = vmul.f32 %v560, %v595
      %v610 = vmul.f32 %v564, %v594
      %v611 = vmul.f32 %v564, %v595
      %v612 = vmul.f32 %v568, %v594
      %v613 = vmul.f32 %v568, %v595
      %v614 = vmul.f32 %v572, %v594
      %v615 = vmul.f32 %v572, %v595
      %v616 = vmul.f32 %v576, %v594
      %v617 = vmul.f32 %v576, %v595
      %v618 = vmul.f32 %v548, %v596
      %v619 = vmul.f32 %v548, %v597
      %v620 = vmul.f32 %v552, %v596
      %v621 = vmul.f32 %v552, %v597
      %v622 = vmul.f32 %v556, %v596
      %v623 = vmul.f32 %v556, %v597
      %v624 = vmul.f32 %v560, %v596
      %v625 = vmul.f32 %v560, %v597
      %v626 = vmul.f32 %v564, %v596
      %v627 = vmul.f32 %v564, %v597
      %v628 = vmul.f32 %v568, %v596
      %v629 = vmul.f32 %v568, %v597
      %v630 = vmul.f32 %v572, %v596
      %v631 = vmul.f32 %v572, %v597
      %v632 = vmul.f32 %v576, %v596
      %v633 = vmul.f32 %v576, %v597
      %v634 = vmul.f32 %v548, %v598
      %v635 = vmul.f32 %v548, %v599
      %v636 = vmul.f32 %v552, %v598
      %v637 = vmul.f32 %v552, %v599
      %v638 = vmul.f32 %v556, %v598
      %v639 = vmul.f32 %v556, %v599
      %v640 = vmul.f32 %v560, %v598
      %v641 = vmul.f32 %v560, %v599
      %v642 = vmul.f32 %v564, %v598
      %v643 = vmul.f32 %v564, %v599
      %v644 = vmul.f32 %v568, %v598
      %v645 = vmul.f32 %v568, %v599
      %v646 = vmul.f32 %v572, %v598
      %v647 = vmul.f32 %v572, %v599
      %v648 = vmul.f32 %v576, %v598
      %v649 = vmul.f32 %v576, %v599
      %v650 = vmul.f32 %v548, %v600
      %v651 = vmul.f32 %v548, %v601
      %v652 = vmul.f32 %v552, %v600
      %v653 = vmul.f32 %v552, %v601
      %v654 = vmul.f32 %v556, %v600
      %v655 = vmul.f32 %v556, %v601
      %v656 = vmul.f32 %v560, %v600
      %v657 = vmul.f32 %v560, %v601
      %v658 = vmul.f32 %v564, %v600
      %v659 = vmul.f32 %v564, %v601
      %v660 = vmul.f32 %v568, %v600
      %v661 = vmul.f32 %v568, %v601
      %v662 = vmul.f32 %v572, %v600
      %v663 = vmul.f32 %v572, %v601
      %v664 = vmul.f32 %v576, %v600
      %v665 = vmul.f32 %v576, %v601
      %v666 = vadd.f32 %v482, %v602
      %v667 = vadd.f32 %v483, %v603
      %v668 = vadd.f32 %v484, %v604
      %v669 = vadd.f32 %v485, %v605
      %v670 = vadd.f32 %v486, %v606
      %v671 = vadd.f32 %v487, %v607
      %v672 = vadd.f32 %v488, %v608
      %v673 = vadd.f32 %v489, %v609
      %v674 = vadd.f32 %v490, %v610
      %v675 = vadd.f32 %v491, %v611
      %v676 = vadd.f32 %v492, %v612
      %v677 = vadd.f32 %v493, %v613
      %v678 = vadd.f32 %v494, %v614
      %v679 = vadd.f32 %v495, %v615
      %v680 = vadd.f32 %v496, %v616
      %v681 = vadd.f32 %v497, %v617
      %v682 = vadd.f32 %v498, %v618
      %v683 = vadd.f32 %v499, %v619
      %v684 = vadd.f32 %v500, %v620
      %v685 = vadd.f32 %v501, %v621
      %v686 = vadd.f32 %v502, %v622
      %v687 = vadd.f32 %v503, %v623
      %v688 = vadd.f32 %v504, %v624
      %v689 = vadd.f32 %v505, %v625
      %v690 = vadd.f32 %v506, %v626
      %v691 = vadd.f32 %v507, %v627
      %v692 = vadd.f32 %v508, %v628
      %v693 = vadd.f32 %v509, %v629
      %v694 = vadd.f32 %v510, %v630
      %v695 = vadd.f32 %v511, %v631
      %v696 = vadd.f32 %v512, %v632
      %v697 = vadd.f32 %v513, %v633
      %v698 = vadd.f32 %v514, %v634
      %v699 = vadd.f32 %v515, %v635
      %v700 = vadd.f32 %v516, %v636
      %v701 = vadd.f32 %v517, %v637
      %v702 = vadd.f32 %v518, %v638
      %v703 = vadd.f32 %v519, %v639
      %v704 = vadd.f32 %v520, %v640
      %v705 = vadd.f32 %v521, %v641
      %v706 = vadd.f32 %v522, %v642
      %v707 = vadd.f32 %v523, %v643
      %v708 = vadd.f32 %v524, %v644
      %v709 = vadd.f32 %v525, %v645
      %v710 = vadd.f32 %v526, %v646
      %v711 = vadd.f32 %v527, %v647
      %v712 = vadd.f32 %v528, %v648
      %v713 = vadd.f32 %v529, %v649
      %v714 = vadd.f32 %v530, %v650
      %v715 = vadd.f32 %v531, %v651
      %v716 = vadd.f32 %v532, %v652
      %v717 = vadd.f32 %v533, %v653
      %v718 = vadd.f32 %v534, %v654
      %v719 = vadd.f32 %v535, %v655
      %v720 = vadd.f32 %v536, %v656
      %v721 = vadd.f32 %v537, %v657
      %v722 = vadd.f32 %v538, %v658
      %v723 = vadd.f32 %v539, %v659
      %v724 = vadd.f32 %v540, %v660
      %v725 = vadd.f32 %v541, %v661
      %v726 = vadd.f32 %v542, %v662
      %v727 = vadd.f32 %v543, %v663
      %v728 = vadd.f32 %v544, %v664
      %v729 = vadd.f32 %v545, %v665
      %730 = vset.pattern.permute.xlu0 3
      %731 = vperm.xlu0 %730, %v222
      %v732 = vpop.permute.xlu0 %731
      %734 = vset.pattern.permute.xlu0 3
      %735 = vperm.xlu0 %734, %v223
      %v736 = vpop.permute.xlu0 %735
      %738 = vset.pattern.permute.xlu0 3
      %739 = vperm.xlu0 %738, %v224
      %v740 = vpop.permute.xlu0 %739
      %742 = vset.pattern.permute.xlu0 3
      %743 = vperm.xlu0 %742, %v225
      %v744 = vpop.permute.xlu0 %743
      %746 = vset.pattern.permute.xlu0 3
      %747 = vperm.xlu0 %746, %v226
      %v748 = vpop.permute.xlu0 %747
      %750 = vset.pattern.permute.xlu0 3
      %751 = vperm.xlu0 %750, %v227
      %v752 = vpop.permute.xlu0 %751
      %754 = vset.pattern.permute.xlu0 3
      %755 = vperm.xlu0 %754, %v228
      %v756 = vpop.permute.xlu0 %755
      %758 = vset.pattern.permute.xlu0 3
      %759 = vperm.xlu0 %758, %v229
      %v760 = vpop.permute.xlu0 %759
      %v762 = vperm.slane %v218, 3
      %v763 = vperm.slane %v218, 7
      %v764 = vperm.slane %v219, 3
      %v765 = vperm.slane %v219, 7
      %v766 = vperm.slane %v220, 3
      %v767 = vperm.slane %v220, 7
      %v768 = vperm.slane %v221, 3
      %v769 = vperm.slane %v221, 7
      %v778 = vperm.slane %v762, 3
      %v779 = vperm.slane %v763, 3
      %v780 = vperm.slane %v764, 3
      %v781 = vperm.slane %v765, 3
      %v782 = vperm.slane %v766, 3
      %v783 = vperm.slane %v767, 3
      %v784 = vperm.slane %v768, 3
      %v785 = vperm.slane %v769, 3
      %v786 = vmul.f32 %v732, %v778
      %v787 = vmul.f32 %v732, %v779
      %v788 = vmul.f32 %v736, %v778
      %v789 = vmul.f32 %v736, %v779
      %v790 = vmul.f32 %v740, %v778
      %v791 = vmul.f32 %v740, %v779
      %v792 = vmul.f32 %v744, %v778
      %v793 = vmul.f32 %v744, %v779
      %v794 = vmul.f32 %v748, %v778
      %v795 = vmul.f32 %v748, %v779
      %v796 = vmul.f32 %v752, %v778
      %v797 = vmul.f32 %v752, %v779
      %v798 = vmul.f32 %v756, %v778
      %v799 = vmul.f32 %v756, %v779
      %v800 = vmul.f32 %v760, %v778
      %v801 = vmul.f32 %v760, %v779
      %v802 = vmul.f32 %v732, %v780
      %v803 = vmul.f32 %v732, %v781
      %v804 = vmul.f32 %v736, %v780
      %v805 = vmul.f32 %v736, %v781
      %v806 = vmul.f32 %v740, %v780
      %v807 = vmul.f32 %v740, %v781
      %v808 = vmul.f32 %v744, %v780
      %v809 = vmul.f32 %v744, %v781
      %v810 = vmul.f32 %v748, %v780
      %v811 = vmul.f32 %v748, %v781
      %v812 = vmul.f32 %v752, %v780
      %v813 = vmul.f32 %v752, %v781
      %v814 = vmul.f32 %v756, %v780
      %v815 = vmul.f32 %v756, %v781
      %v816 = vmul.f32 %v760, %v780
      %v817 = vmul.f32 %v760, %v781
      %v818 = vmul.f32 %v732, %v782
      %v819 = vmul.f32 %v732, %v783
      %v820 = vmul.f32 %v736, %v782
      %v821 = vmul.f32 %v736, %v783
      %v822 = vmul.f32 %v740, %v782
      %v823 = vmul.f32 %v740, %v783
      %v824 = vmul.f32 %v744, %v782
      %v825 = vmul.f32 %v744, %v783
      %v826 = vmul.f32 %v748, %v782
      %v827 = vmul.f32 %v748, %v783
      %v828 = vmul.f32 %v752, %v782
      %v829 = vmul.f32 %v752, %v783
      %v830 = vmul.f32 %v756, %v782
      %v831 = vmul.f32 %v756, %v783
      %v832 = vmul.f32 %v760, %v782
      %v833 = vmul.f32 %v760, %v783
      %v834 = vmul.f32 %v732, %v784
      %v835 = vmul.f32 %v732, %v785
      %v836 = vmul.f32 %v736, %v784
      %v837 = vmul.f32 %v736, %v785
      %v838 = vmul.f32 %v740, %v784
      %v839 = vmul.f32 %v740, %v785
      %v840 = vmul.f32 %v744, %v784
      %v841 = vmul.f32 %v744, %v785
      %v842 = vmul.f32 %v748, %v784
      %v843 = vmul.f32 %v748, %v785
      %v844 = vmul.f32 %v752, %v784
      %v845 = vmul.f32 %v752, %v785
      %v846 = vmul.f32 %v756, %v784
      %v847 = vmul.f32 %v756, %v785
      %v848 = vmul.f32 %v760, %v784
      %v849 = vmul.f32 %v760, %v785
      %v850 = vadd.f32 %v666, %v786
      %v851 = vadd.f32 %v667, %v787
      %v852 = vadd.f32 %v668, %v788
      %v853 = vadd.f32 %v669, %v789
      %v854 = vadd.f32 %v670, %v790
      %v855 = vadd.f32 %v671, %v791
      %v856 = vadd.f32 %v672, %v792
      %v857 = vadd.f32 %v673, %v793
      %v858 = vadd.f32 %v674, %v794
      %v859 = vadd.f32 %v675, %v795
      %v860 = vadd.f32 %v676, %v796
      %v861 = vadd.f32 %v677, %v797
      %v862 = vadd.f32 %v678, %v798
      %v863 = vadd.f32 %v679, %v799
      %v864 = vadd.f32 %v680, %v800
      %v865 = vadd.f32 %v681, %v801
      %v866 = vadd.f32 %v682, %v802
      %v867 = vadd.f32 %v683, %v803
      %v868 = vadd.f32 %v684, %v804
      %v869 = vadd.f32 %v685, %v805
      %v870 = vadd.f32 %v686, %v806
      %v871 = vadd.f32 %v687, %v807
      %v872 = vadd.f32 %v688, %v808
      %v873 = vadd.f32 %v689, %v809
      %v874 = vadd.f32 %v690, %v810
      %v875 = vadd.f32 %v691, %v811
      %v876 = vadd.f32 %v692, %v812
      %v877 = vadd.f32 %v693, %v813
      %v878 = vadd.f32 %v694, %v814
      %v879 = vadd.f32 %v695, %v815
      %v880 = vadd.f32 %v696, %v816
      %v881 = vadd.f32 %v697, %v817
      %v882 = vadd.f32 %v698, %v818
      %v883 = vadd.f32 %v699, %v819
      %v884 = vadd.f32 %v700, %v820
      %v885 = vadd.f32 %v701, %v821
      %v886 = vadd.f32 %v702, %v822
      %v887 = vadd.f32 %v703, %v823
      %v888 = vadd.f32 %v704, %v824
      %v889 = vadd.f32 %v705, %v825
      %v890 = vadd.f32 %v706, %v826
      %v891 = vadd.f32 %v707, %v827
      %v892 = vadd.f32 %v708, %v828
      %v893 = vadd.f32 %v709, %v829
      %v894 = vadd.f32 %v710, %v830
      %v895 = vadd.f32 %v711, %v831
      %v896 = vadd.f32 %v712, %v832
      %v897 = vadd.f32 %v713, %v833
      %v898 = vadd.f32 %v714, %v834
      %v899 = vadd.f32 %v715, %v835
      %v900 = vadd.f32 %v716, %v836
      %v901 = vadd.f32 %v717, %v837
      %v902 = vadd.f32 %v718, %v838
      %v903 = vadd.f32 %v719, %v839
      %v904 = vadd.f32 %v720, %v840
      %v905 = vadd.f32 %v721, %v841
      %v906 = vadd.f32 %v722, %v842
      %v907 = vadd.f32 %v723, %v843
      %v908 = vadd.f32 %v724, %v844
      %v909 = vadd.f32 %v725, %v845
      %v910 = vadd.f32 %v726, %v846
      %v911 = vadd.f32 %v727, %v847
      %v912 = vadd.f32 %v728, %v848
      %v913 = vadd.f32 %v729, %v849
      %v914 = vld [vmem:[%s2] sm:$0xff]
      %v915 = vld [vmem:[%s2 + $0x8] sm:$0xff]
      %v916 = vld [vmem:[%s2 + $0x10] sm:$0xff]
      %v917 = vld [vmem:[%s2 + $0x18] sm:$0xff]
      %v918 = vld [vmem:[%s2 + $0x20] sm:$0xff]
      %v919 = vld [vmem:[%s2 + $0x28] sm:$0xff]
      %v920 = vld [vmem:[%s2 + $0x30] sm:$0xff]
      %v921 = vld [vmem:[%s2 + $0x38] sm:$0xff]
      %923 = vset.pattern.permute.xlu0 0
      %924 = vperm.xlu0 %923, %v914
      %v925 = vpop.permute.xlu0 %924
      %928 = vset.pattern.permute.xlu0 0
      %929 = vperm.xlu0 %928, %v915
      %v930 = vpop.permute.xlu0 %929
      %933 = vset.pattern.permute.xlu0 0
      %934 = vperm.xlu0 %933, %v916
      %v935 = vpop.permute.xlu0 %934
      %938 = vset.pattern.permute.xlu0 0
      %939 = vperm.xlu0 %938, %v917
      %v940 = vpop.permute.xlu0 %939
      %943 = vset.pattern.permute.xlu0 0
      %944 = vperm.xlu0 %943, %v918
      %v945 = vpop.permute.xlu0 %944
      %948 = vset.pattern.permute.xlu0 0
      %949 = vperm.xlu0 %948, %v919
      %v950 = vpop.permute.xlu0 %949
      %953 = vset.pattern.permute.xlu0 0
      %954 = vperm.xlu0 %953, %v920
      %v955 = vpop.permute.xlu0 %954
      %958 = vset.pattern.permute.xlu0 0
      %959 = vperm.xlu0 %958, %v921
      %v960 = vpop.permute.xlu0 %959
      %v962 = vadd.f32 %v850, %v925
      %v963 = vadd.f32 %v851, %v925
      %v964 = vadd.f32 %v852, %v930
      %v965 = vadd.f32 %v853, %v930
      %v966 = vadd.f32 %v854, %v935
      %v967 = vadd.f32 %v855, %v935
      %v968 = vadd.f32 %v856, %v940
      %v969 = vadd.f32 %v857, %v940
      %v970 = vadd.f32 %v858, %v945
      %v971 = vadd.f32 %v859, %v945
      %v972 = vadd.f32 %v860, %v950
      %v973 = vadd.f32 %v861, %v950
      %v974 = vadd.f32 %v862, %v955
      %v975 = vadd.f32 %v863, %v955
      %v976 = vadd.f32 %v864, %v960
      %v977 = vadd.f32 %v865, %v960
      %v978 = vadd.f32 %v866, %v925
      %v979 = vadd.f32 %v867, %v925
      %v980 = vadd.f32 %v868, %v930
      %v981 = vadd.f32 %v869, %v930
      %v982 = vadd.f32 %v870, %v935
      %v983 = vadd.f32 %v871, %v935
      %v984 = vadd.f32 %v872, %v940
      %v985 = vadd.f32 %v873, %v940
      %v986 = vadd.f32 %v874, %v945
      %v987 = vadd.f32 %v875, %v945
      %v988 = vadd.f32 %v876, %v950
      %v989 = vadd.f32 %v877, %v950
      %v990 = vadd.f32 %v878, %v955
      %v991 = vadd.f32 %v879, %v955
      %v992 = vadd.f32 %v880, %v960
      %v993 = vadd.f32 %v881, %v960
      %v994 = vadd.f32 %v882, %v925
      %v995 = vadd.f32 %v883, %v925
      %v996 = vadd.f32 %v884, %v930
      %v997 = vadd.f32 %v885, %v930
      %v998 = vadd.f32 %v886, %v935
      %v999 = vadd.f32 %v887, %v935
      %v1000 = vadd.f32 %v888, %v940
      %v1001 = vadd.f32 %v889, %v940
      %v1002 = vadd.f32 %v890, %v945
      %v1003 = vadd.f32 %v891, %v945
      %v1004 = vadd.f32 %v892, %v950
      %v1005 = vadd.f32 %v893, %v950
      %v1006 = vadd.f32 %v894, %v955
      %v1007 = vadd.f32 %v895, %v955
      %v1008 = vadd.f32 %v896, %v960
      %v1009 = vadd.f32 %v897, %v960
      %v1010 = vadd.f32 %v898, %v925
      %v1011 = vadd.f32 %v899, %v925
      %v1012 = vadd.f32 %v900, %v930
      %v1013 = vadd.f32 %v901, %v930
      %v1014 = vadd.f32 %v902, %v935
      %v1015 = vadd.f32 %v903, %v935
      %v1016 = vadd.f32 %v904, %v940
      %v1017 = vadd.f32 %v905, %v940
      %v1018 = vadd.f32 %v906, %v945
      %v1019 = vadd.f32 %v907, %v945
      %v1020 = vadd.f32 %v908, %v950
      %v1021 = vadd.f32 %v909, %v950
      %v1022 = vadd.f32 %v910, %v955
      %v1023 = vadd.f32 %v911, %v955
      %v1024 = vadd.f32 %v912, %v960
      %v1025 = vadd.f32 %v913, %v960
      %1026 = vst [vmem:[%s215] sm:$0xff] %v962
      %vm1027 = vcmask 556032
      %1028 = vst.msk [vmem:[%s215 + $0x8] sm:$0xff] %vm1027, %v963
      %1029 = vst [vmem:[%s215 + $0x10] sm:$0xff] %v964
      %1030 = vst.msk [vmem:[%s215 + $0x18] sm:$0xff] %vm1027, %v965
      %1031 = vst [vmem:[%s215 + $0x20] sm:$0xff] %v966
      %1032 = vst.msk [vmem:[%s215 + $0x28] sm:$0xff] %vm1027, %v967
      %1033 = vst [vmem:[%s215 + $0x30] sm:$0xff] %v968
      %1034 = vst.msk [vmem:[%s215 + $0x38] sm:$0xff] %vm1027, %v969
      %1035 = vst [vmem:[%s215 + $0x40] sm:$0xff] %v970
      %1036 = vst.msk [vmem:[%s215 + $0x48] sm:$0xff] %vm1027, %v971
      %1037 = vst [vmem:[%s215 + $0x50] sm:$0xff] %v972
      %1038 = vst.msk [vmem:[%s215 + $0x58] sm:$0xff] %vm1027, %v973
      %1039 = vst [vmem:[%s215 + $0x60] sm:$0xff] %v974
      %1040 = vst.msk [vmem:[%s215 + $0x68] sm:$0xff] %vm1027, %v975
      %1041 = vst [vmem:[%s215 + $0x70] sm:$0xff] %v976
      %1042 = vst.msk [vmem:[%s215 + $0x78] sm:$0xff] %vm1027, %v977
      %1043 = vst [vmem:[%s215 + $0x80] sm:$0xff] %v978
      %1044 = vst.msk [vmem:[%s215 + $0x88] sm:$0xff] %vm1027, %v979
      %1045 = vst [vmem:[%s215 + $0x90] sm:$0xff] %v980
      %1046 = vst.msk [vmem:[%s215 + $0x98] sm:$0xff] %vm1027, %v981
      %1047 = vst [vmem:[%s215 + $0xa0] sm:$0xff] %v982
      %1048 = vst.msk [vmem:[%s215 + $0xa8] sm:$0xff] %vm1027, %v983
      %1049 = vst [vmem:[%s215 + $0xb0] sm:$0xff] %v984
      %1050 = vst.msk [vmem:[%s215 + $0xb8] sm:$0xff] %vm1027, %v985
      %1051 = vst [vmem:[%s215 + $0xc0] sm:$0xff] %v986
      %1052 = vst.msk [vmem:[%s215 + $0xc8] sm:$0xff] %vm1027, %v987
      %1053 = vst [vmem:[%s215 + $0xd0] sm:$0xff] %v988
      %1054 = vst.msk [vmem:[%s215 + $0xd8] sm:$0xff] %vm1027, %v989
      %1055 = vst [vmem:[%s215 + $0xe0] sm:$0xff] %v990
      %1056 = vst.msk [vmem:[%s215 + $0xe8] sm:$0xff] %vm1027, %v991
      %1057 = vst [vmem:[%s215 + $0xf0] sm:$0xff] %v992
      %1058 = vst.msk [vmem:[%s215 + $0xf8] sm:$0xff] %vm1027, %v993
      %1059 = vst [vmem:[%s215 + $0x100] sm:$0xff] %v994
      %1060 = vst.msk [vmem:[%s215 + $0x108] sm:$0xff] %vm1027, %v995
      %1061 = vst [vmem:[%s215 + $0x110] sm:$0xff] %v996
      %1062 = vst.msk [vmem:[%s215 + $0x118] sm:$0xff] %vm1027, %v997
      %1063 = vst [vmem:[%s215 + $0x120] sm:$0xff] %v998
      %1064 = vst.msk [vmem:[%s215 + $0x128] sm:$0xff] %vm1027, %v999
      %1065 = vst [vmem:[%s215 + $0x130] sm:$0xff] %v1000
      %1066 = vst.msk [vmem:[%s215 + $0x138] sm:$0xff] %vm1027, %v1001
      %1067 = vst [vmem:[%s215 + $0x140] sm:$0xff] %v1002
      %1068 = vst.msk [vmem:[%s215 + $0x148] sm:$0xff] %vm1027, %v1003
      %1069 = vst [vmem:[%s215 + $0x150] sm:$0xff] %v1004
      %1070 = vst.msk [vmem:[%s215 + $0x158] sm:$0xff] %vm1027, %v1005
      %1071 = vst [vmem:[%s215 + $0x160] sm:$0xff] %v1006
      %1072 = vst.msk [vmem:[%s215 + $0x168] sm:$0xff] %vm1027, %v1007
      %1073 = vst [vmem:[%s215 + $0x170] sm:$0xff] %v1008
      %1074 = vst.msk [vmem:[%s215 + $0x178] sm:$0xff] %vm1027, %v1009
      %1075 = vst [vmem:[%s215 + $0x180] sm:$0xff] %v1010
      %1076 = vst.msk [vmem:[%s215 + $0x188] sm:$0xff] %vm1027, %v1011
      %1077 = vst [vmem:[%s215 + $0x190] sm:$0xff] %v1012
      %1078 = vst.msk [vmem:[%s215 + $0x198] sm:$0xff] %vm1027, %v1013
      %1079 = vst [vmem:[%s215 + $0x1a0] sm:$0xff] %v1014
      %1080 = vst.msk [vmem:[%s215 + $0x1a8] sm:$0xff] %vm1027, %v1015
      %1081 = vst [vmem:[%s215 + $0x1b0] sm:$0xff] %v1016
      %1082 = vst.msk [vmem:[%s215 + $0x1b8] sm:$0xff] %vm1027, %v1017
      %1083 = vst [vmem:[%s215 + $0x1c0] sm:$0xff] %v1018
      %1084 = vst.msk [vmem:[%s215 + $0x1c8] sm:$0xff] %vm1027, %v1019
      %1085 = vst [vmem:[%s215 + $0x1d0] sm:$0xff] %v1020
      %1086 = vst.msk [vmem:[%s215 + $0x1d8] sm:$0xff] %vm1027, %v1021
      %1087 = vst [vmem:[%s215 + $0x1e0] sm:$0xff] %v1022
      %1088 = vst.msk [vmem:[%s215 + $0x1e8] sm:$0xff] %vm1027, %v1023
      %1089 = vst [vmem:[%s215 + $0x1f0] sm:$0xff] %v1024
      %1090 = vst.msk [vmem:[%s215 + $0x1f8] sm:$0xff] %vm1027, %v1025
      %s1091 = smul.u32 4, %s18
      %s1092 = smul.u32 2, %s19
      %p1093 = scmp.lt.s32.totalorder %s1091, 7
      %s1094 = scalar_select %p1093, %s1091, 7
      %p1095 = scmp.lt.s32.totalorder %s1092, 1
      %s1096 = scalar_select %p1095, %s1092, 1
      %s1097 = smul.addr %s1094, 16
      %s1098 = sadd.s32 %s1096, %s1097
      %s1099 = smul.addr %s1098, 8
      %s1100 = scalar_lea.vmem %s3, %s1099
      // Predicated region
      $region33: #{conv1_forward.1} parent=31 // pred_check
        %p1101 = pneg %p116
      $region34: #{conv1_forward.1} parent=31 // pred_check_branch
        %1103 = sbr.rel (%p1101) target = $region36
      $region35: #{conv1_forward.1} parent=31 // pred_region
        %s1104 = smul.u32 4, %s18
        %s1105 = smul.u32 2, %s19
      $region36: #{conv1_forward.1} parent=31 // pred_fallthru
        _
    $region32: #{conv1_forward.1} parent=5 // pred_fallthru
      _
    %p1106 = scmp.le.s32.totalorder 2, %s9
    // Predicated region
    $region37: #{conv1_forward.1} parent=5 // pred_check
      %p1107 = pneg %p1106
    $region38: #{conv1_forward.1} parent=5 // pred_check_branch
      %1109 = sbr.rel (%p1107) target = $region40
    $region39: #{conv1_forward.1} parent=5 // pred_region
      %s1110 = ssub.s32 %s9, 2
      // Predicated region
      $region41: #{conv1_forward.1} parent=39 // pred_check
        %p1111 = pneg %p122
      $region42: #{conv1_forward.1} parent=39 // pred_check_branch
        %1113 = sbr.rel (%p1111) target = $region44
      $region43: #{conv1_forward.1} parent=39 // pred_region
        %s1114 = smul.u32 4, %s20
        %s1115 = smul.u32 2, %s21
        %p1116 = scmp.lt.s32.totalorder %s1114, 7
        %s1117 = scalar_select %p1116, %s1114, 7
        %p1118 = scmp.lt.s32.totalorder %s1115, 1
        %s1119 = scalar_select %p1118, %s1115, 1
        %s1120 = smul.addr %s1117, 16
        %s1121 = sadd.s32 %s1119, %s1120
        %s1122 = smul.addr %s1121, 8
        %s1123 = scalar_lea.vmem %s3, %s1122
      $region44: #{conv1_forward.1} parent=39 // pred_fallthru
        _
    $region40: #{conv1_forward.1} parent=5 // pred_fallthru
      _
  $region6: #{conv1_forward.1} parent=0 // loop_footer
    %s13 = sadd.s32 1, %s9
  $region7: #{conv1_forward.1} parent=0 // loop_footer_branch
    %8 = sbr.rel target = $region3
  $region8: #{conv1_forward.1} parent=0 // loop_exit
    _

</llo_original>
